<compile_context>
chip_gen: v7x
topology: tpu7x:2x2x1
jax: 0.10.0
libtpu: 0.0.40
codegen_flags: <defaults>
</compile_context>

<pallas_src>
import functools

import jax
import jax.numpy as jnp
from jax.experimental import pallas as pl
from jax.experimental.pallas import tpu as pltpu


def _soft_dice_kernel(p_ref, t_ref, out_ref, *, hw, padded):
    # p_ref, t_ref: (1, C, tR, L) logits / targets for one (batch, tile).
    # out_ref:      (1, 1, 8, 128) per-(batch, tile) partials in row 0,
    #               lanes 0 (inner), 1 (sum p^2), 2 (sum t^2).
    c_dim = p_ref.shape[1]
    tr = p_ref.shape[2]
    lane = p_ref.shape[3]

    # Pass 1: channel max (numerically stable softmax), unrolled on the VPU.
    m = p_ref[0, 0].astype(jnp.float32)
    for c in range(1, c_dim):
        m = jnp.maximum(m, p_ref[0, c].astype(jnp.float32))

    # Pass 2: single accumulate pass — keeps only ~6-8 (tR, L) f32 slabs live
    # regardless of C, no per-channel Python lists.
    denom = a_acc = b_acc = tsq = None
    for c in range(c_dim):
        e = jnp.exp(p_ref[0, c].astype(jnp.float32) - m)
        t = t_ref[0, c].astype(jnp.float32)
        if c == 0:
            denom = e
            a_acc = e * t
            b_acc = e * e
            tsq = t * t
        else:
            denom = denom + e
            a_acc = a_acc + e * t
            b_acc = b_acc + e * e
            tsq = tsq + t * t

    # EUP fast-path reciprocal + one Newton step -> near-exact normalization.
    inv = pl.reciprocal(denom, approx=True)
    inv = inv * (2.0 - denom * inv)

    inner = a_acc * inv
    p_sq = b_acc * (inv * inv)

    if padded:
        # Zero-padded logits give uniform 1/C probabilities, so only the p^2
        # term needs masking (padded targets are zero -> inner/t^2 already 0).
        j = pl.program_id(1)
        ri = jax.lax.broadcasted_iota(jnp.int32, (tr, lane), 0)
        li = jax.lax.broadcasted_iota(jnp.int32, (tr, lane), 1)
        flat = (j * tr + ri) * lane + li
        p_sq = jnp.where(flat < hw, p_sq, 0.0)

    inner_s = jnp.sum(inner, keepdims=True)   # (1, 1)
    psq_s = jnp.sum(p_sq, keepdims=True)
    tsq_s = jnp.sum(tsq, keepdims=True)

    lane_idx = jax.lax.broadcasted_iota(jnp.int32, (8, 128), 1)
    tile = jnp.where(
        lane_idx == 0, jnp.broadcast_to(inner_s, (8, 128)),
        jnp.where(
            lane_idx == 1, jnp.broadcast_to(psq_s, (8, 128)),
            jnp.where(lane_idx == 2, jnp.broadcast_to(tsq_s, (8, 128)), 0.0)))
    out_ref[0, 0] = tile


def _choose_tiling(hw, c, itemsizes, block_budget_bytes):
    """View the flattened spatial axis as (rows, lane); tile rows by tr.

    Per-input block = (1, C, tr, lane) is kept <= block_budget_bytes (4 MiB
    default), so 2 inputs x 2 pipeline buffers plus the ~8 live f32 slabs in
    the kernel body stay well inside the explicit 48 MiB VMEM limit on every
    generation (v5e/v6e: 128 MiB physical, v7x: 64 MiB physical).
    Returns (lane, tr, rows_padded, nblk).
    """
    # Sublane packing: tr multiple of 8 (f32) / 16 (bf16) / 32 (int8).
    sub = 8
    for isz in itemsizes:
        sub = max(sub, 32 // max(int(isz), 1))

    # Lane (last-dim) size: a multiple of 128 dividing hw if possible,
    # otherwise 128 with row padding (+ in-kernel mask).
    lane = 128
    for cand in (1024, 512, 256, 128):
        if hw % cand == 0:
            lane = cand
            break
    rows = -(-hw // lane)

    max_isz = max(int(i) for i in itemsizes)
    max_tr = block_budget_bytes // (c * lane * max_isz)
    max_tr = max(sub, (max_tr // sub) * sub)

    if rows <= max_tr:
        tr = rows                      # single row-block: full extent is legal
        rows_p = rows
    else:
        # Prefer the largest divisor of rows that is a multiple of `sub`
        # (no padding, no masked tail).
        tr = 0
        d = sub
        while d <= max_tr:
            if rows % d == 0:
                tr = d
            d += sub
        if tr == 0:
            # Awkward row count: keep the budgeted tile and pad + mask
            # instead of blowing past scoped VMEM with a giant block.
            tr = max_tr
        rows_p = -(-rows // tr) * tr
    return lane, tr, rows_p, rows_p // tr


def soft_dice_loss(preds, targets, *, block_budget_bytes=4 * 1024 * 1024):
    """SoftDiceLoss.forward for NCHW `preds` (logits) and `targets`.

    Returns a scalar float32 loss.  f32/bf16 inputs supported (upcast
    in-kernel); mixed dtypes between preds and targets are allowed.
    """
    assert preds.shape == targets.shape and preds.ndim == 4
    n, c, h, w = preds.shape
    hw = h * w
    itemsizes = (jnp.dtype(preds.dtype).itemsize,
                 jnp.dtype(targets.dtype).itemsize)
    lane, tr, rows_p, nblk = _choose_tiling(hw, c, itemsizes,
                                            block_budget_bytes)
    padded_hw = rows_p * lane
    need_pad = padded_hw != hw

    preds3 = preds.reshape(n, c, hw)          # free row-major views
    targets3 = targets.reshape(n, c, hw)
    if need_pad:
        pad = padded_hw - hw
        preds3 = jnp.pad(preds3, ((0, 0), (0, 0), (0, pad)))
        targets3 = jnp.pad(targets3, ((0, 0), (0, 0), (0, pad)))
    preds4 = preds3.reshape(n, c, rows_p, lane)
    targets4 = targets3.reshape(n, c, rows_p, lane)

    kernel = functools.partial(_soft_dice_kernel, hw=hw, padded=need_pad)

    partials = pl.pallas_call(
        kernel,
        out_shape=jax.ShapeDtypeStruct((n, nblk, 8, 128), jnp.float32),
        grid_spec=pltpu.PrefetchScalarGridSpec(
            num_scalar_prefetch=0,
            grid=(n, nblk),
            in_specs=[
                pl.BlockSpec((1, c, tr, lane), lambda i, j: (i, 0, j, 0)),
                pl.BlockSpec((1, c, tr, lane), lambda i, j: (i, 0, j, 0)),
            ],
            out_specs=pl.BlockSpec((1, 1, 8, 128), lambda i, j: (i, j, 0, 0)),
        ),
        compiler_params=pltpu.CompilerParams(
            dimension_semantics=("parallel", "parallel"),
            vmem_limit_bytes=48 * 1024 * 1024),
    )(preds4, targets4)

    inner = jnp.sum(partials[:, :, 0, 0])
    p_sq = jnp.sum(partials[:, :, 0, 1])
    t_sq = jnp.sum(partials[:, :, 0, 2])
    return 1.0 - (2.0 * inner + 1e-05) / (p_sq + t_sq + 1e-05)


def _reference(preds, targets):
    # Pure-JAX reference matching the PyTorch SoftDiceLoss semantics.
    p = jax.nn.softmax(preds.astype(jnp.float32), axis=1)
    t = targets.astype(jnp.float32)
    inner = jnp.sum(p * t)
    return 1.0 - (2.0 * inner + 1e-05) / (jnp.sum(p * p) + jnp.sum(t * t) + 1e-05)


if __name__ == "__main__":
    key = jax.random.PRNGKey(0)
    k_pred, k_tgt = jax.random.split(key)

    N, C, H, W = 2, 4, 16, 16
    preds = jax.random.normal(k_pred, (N, C, H, W), dtype=jnp.float32)
    # One-hot segmentation targets (NCHW); bf16 is exact for 0/1 values and
    # cuts HBM traffic on this bandwidth-bound kernel.
    labels = jax.random.randint(k_tgt, (N, H, W), 0, C)
    targets = jax.nn.one_hot(labels, C, axis=1, dtype=jnp.bfloat16)

    loss = jax.block_until_ready(soft_dice_loss(preds, targets))
    ref = jax.block_until_ready(_reference(preds, targets))

    # Newton-refined reciprocal -> near-exact agreement with the reference.
    assert jnp.allclose(loss, ref, rtol=1e-4, atol=1e-4), (loss, ref)

    print("KERNEL_OK")
</pallas_src>

<mosaic_0001>
module attributes {stable_mosaic.version = 11 : i64} {
  func.func @_soft_dice_kernel(%arg0: i32, %arg1: i32, %arg2: memref<1x4x1x256xf32, #tpu.memory_space<vmem>>, %arg3: memref<1x4x1x256xbf16, #tpu.memory_space<vmem>>, %arg4: memref<1x1x8x128xf32, #tpu.memory_space<vmem>>) attributes {dimension_semantics = [#tpu.dimension_semantics<parallel>, #tpu.dimension_semantics<parallel>], iteration_bounds = array<i64: 2, 1>, scalar_prefetch = 0 : i64, scratch_operands = 0 : i64, tpu.core_type = #tpu.core_type<tc>, window_params = [{transform_indices = @transform_0, window_bounds = array<i64: 1, 4, 1, 256>}, {transform_indices = @transform_1, window_bounds = array<i64: 1, 4, 1, 256>}, {transform_indices = @transform_2, window_bounds = array<i64: 1, 1, 8, 128>}]} {
    %c0 = arith.constant 0 : index
    %c0_0 = arith.constant 0 : index
    %c0_1 = arith.constant 0 : index
    %c0_2 = arith.constant 0 : index
    %0 = vector.load %arg2[%c0, %c0_0, %c0_1, %c0_2] : memref<1x4x1x256xf32, #tpu.memory_space<vmem>>, vector<1x1x1x256xf32>
    %1 = vector.shape_cast %0 : vector<1x1x1x256xf32> to vector<1x256xf32>
    %c0_3 = arith.constant 0 : index
    %c1 = arith.constant 1 : index
    %c0_4 = arith.constant 0 : index
    %c0_5 = arith.constant 0 : index
    %2 = vector.load %arg2[%c0_3, %c1, %c0_4, %c0_5] : memref<1x4x1x256xf32, #tpu.memory_space<vmem>>, vector<1x1x1x256xf32>
    %3 = vector.shape_cast %2 : vector<1x1x1x256xf32> to vector<1x256xf32>
    %4 = arith.maximumf %1, %3 : vector<1x256xf32>
    %c0_6 = arith.constant 0 : index
    %c2 = arith.constant 2 : index
    %c0_7 = arith.constant 0 : index
    %c0_8 = arith.constant 0 : index
    %5 = vector.load %arg2[%c0_6, %c2, %c0_7, %c0_8] : memref<1x4x1x256xf32, #tpu.memory_space<vmem>>, vector<1x1x1x256xf32>
    %6 = vector.shape_cast %5 : vector<1x1x1x256xf32> to vector<1x256xf32>
    %7 = arith.maximumf %4, %6 : vector<1x256xf32>
    %c0_9 = arith.constant 0 : index
    %c3 = arith.constant 3 : index
    %c0_10 = arith.constant 0 : index
    %c0_11 = arith.constant 0 : index
    %8 = vector.load %arg2[%c0_9, %c3, %c0_10, %c0_11] : memref<1x4x1x256xf32, #tpu.memory_space<vmem>>, vector<1x1x1x256xf32>
    %9 = vector.shape_cast %8 : vector<1x1x1x256xf32> to vector<1x256xf32>
    %10 = arith.maximumf %7, %9 : vector<1x256xf32>
    %c0_12 = arith.constant 0 : index
    %c0_13 = arith.constant 0 : index
    %c0_14 = arith.constant 0 : index
    %c0_15 = arith.constant 0 : index
    %11 = vector.load %arg2[%c0_12, %c0_13, %c0_14, %c0_15] : memref<1x4x1x256xf32, #tpu.memory_space<vmem>>, vector<1x1x1x256xf32>
    %12 = vector.shape_cast %11 : vector<1x1x1x256xf32> to vector<1x256xf32>
    %13 = arith.subf %12, %10 : vector<1x256xf32>
    %14 = math.exp %13 : vector<1x256xf32>
    %c0_16 = arith.constant 0 : index
    %c0_17 = arith.constant 0 : index
    %c0_18 = arith.constant 0 : index
    %c0_19 = arith.constant 0 : index
    %15 = vector.load %arg3[%c0_16, %c0_17, %c0_18, %c0_19] : memref<1x4x1x256xbf16, #tpu.memory_space<vmem>>, vector<1x1x1x256xbf16>
    %16 = vector.shape_cast %15 : vector<1x1x1x256xbf16> to vector<1x256xbf16>
    %17 = arith.extf %16 : vector<1x256xbf16> to vector<1x256xf32>
    %18 = arith.mulf %14, %17 : vector<1x256xf32>
    %19 = arith.mulf %14, %14 : vector<1x256xf32>
    %20 = arith.mulf %17, %17 : vector<1x256xf32>
    %c0_20 = arith.constant 0 : index
    %c1_21 = arith.constant 1 : index
    %c0_22 = arith.constant 0 : index
    %c0_23 = arith.constant 0 : index
    %21 = vector.load %arg2[%c0_20, %c1_21, %c0_22, %c0_23] : memref<1x4x1x256xf32, #tpu.memory_space<vmem>>, vector<1x1x1x256xf32>
    %22 = vector.shape_cast %21 : vector<1x1x1x256xf32> to vector<1x256xf32>
    %23 = arith.subf %22, %10 : vector<1x256xf32>
    %24 = math.exp %23 : vector<1x256xf32>
    %c0_24 = arith.constant 0 : index
    %c1_25 = arith.constant 1 : index
    %c0_26 = arith.constant 0 : index
    %c0_27 = arith.constant 0 : index
    %25 = vector.load %arg3[%c0_24, %c1_25, %c0_26, %c0_27] : memref<1x4x1x256xbf16, #tpu.memory_space<vmem>>, vector<1x1x1x256xbf16>
    %26 = vector.shape_cast %25 : vector<1x1x1x256xbf16> to vector<1x256xbf16>
    %27 = arith.extf %26 : vector<1x256xbf16> to vector<1x256xf32>
    %28 = arith.addf %14, %24 : vector<1x256xf32>
    %29 = arith.mulf %24, %27 : vector<1x256xf32>
    %30 = arith.addf %18, %29 : vector<1x256xf32>
    %31 = arith.mulf %24, %24 : vector<1x256xf32>
    %32 = arith.addf %19, %31 : vector<1x256xf32>
    %33 = arith.mulf %27, %27 : vector<1x256xf32>
    %34 = arith.addf %20, %33 : vector<1x256xf32>
    %c0_28 = arith.constant 0 : index
    %c2_29 = arith.constant 2 : index
    %c0_30 = arith.constant 0 : index
    %c0_31 = arith.constant 0 : index
    %35 = vector.load %arg2[%c0_28, %c2_29, %c0_30, %c0_31] : memref<1x4x1x256xf32, #tpu.memory_space<vmem>>, vector<1x1x1x256xf32>
    %36 = vector.shape_cast %35 : vector<1x1x1x256xf32> to vector<1x256xf32>
    %37 = arith.subf %36, %10 : vector<1x256xf32>
    %38 = math.exp %37 : vector<1x256xf32>
    %c0_32 = arith.constant 0 : index
    %c2_33 = arith.constant 2 : index
    %c0_34 = arith.constant 0 : index
    %c0_35 = arith.constant 0 : index
    %39 = vector.load %arg3[%c0_32, %c2_33, %c0_34, %c0_35] : memref<1x4x1x256xbf16, #tpu.memory_space<vmem>>, vector<1x1x1x256xbf16>
    %40 = vector.shape_cast %39 : vector<1x1x1x256xbf16> to vector<1x256xbf16>
    %41 = arith.extf %40 : vector<1x256xbf16> to vector<1x256xf32>
    %42 = arith.addf %28, %38 : vector<1x256xf32>
    %43 = arith.mulf %38, %41 : vector<1x256xf32>
    %44 = arith.addf %30, %43 : vector<1x256xf32>
    %45 = arith.mulf %38, %38 : vector<1x256xf32>
    %46 = arith.addf %32, %45 : vector<1x256xf32>
    %47 = arith.mulf %41, %41 : vector<1x256xf32>
    %48 = arith.addf %34, %47 : vector<1x256xf32>
    %c0_36 = arith.constant 0 : index
    %c3_37 = arith.constant 3 : index
    %c0_38 = arith.constant 0 : index
    %c0_39 = arith.constant 0 : index
    %49 = vector.load %arg2[%c0_36, %c3_37, %c0_38, %c0_39] : memref<1x4x1x256xf32, #tpu.memory_space<vmem>>, vector<1x1x1x256xf32>
    %50 = vector.shape_cast %49 : vector<1x1x1x256xf32> to vector<1x256xf32>
    %51 = arith.subf %50, %10 : vector<1x256xf32>
    %52 = math.exp %51 : vector<1x256xf32>
    %c0_40 = arith.constant 0 : index
    %c3_41 = arith.constant 3 : index
    %c0_42 = arith.constant 0 : index
    %c0_43 = arith.constant 0 : index
    %53 = vector.load %arg3[%c0_40, %c3_41, %c0_42, %c0_43] : memref<1x4x1x256xbf16, #tpu.memory_space<vmem>>, vector<1x1x1x256xbf16>
    %54 = vector.shape_cast %53 : vector<1x1x1x256xbf16> to vector<1x256xbf16>
    %55 = arith.extf %54 : vector<1x256xbf16> to vector<1x256xf32>
    %56 = arith.addf %42, %52 : vector<1x256xf32>
    %57 = arith.mulf %52, %55 : vector<1x256xf32>
    %58 = arith.addf %44, %57 : vector<1x256xf32>
    %59 = arith.mulf %52, %52 : vector<1x256xf32>
    %60 = arith.addf %46, %59 : vector<1x256xf32>
    %61 = arith.mulf %55, %55 : vector<1x256xf32>
    %62 = arith.addf %48, %61 : vector<1x256xf32>
    %63 = tpu.reciprocal %56 {approx = true} : vector<1x256xf32> -> vector<1x256xf32>
    %64 = arith.mulf %56, %63 : vector<1x256xf32>
    %cst = arith.constant 2.000000e+00 : f32
    %65 = vector.broadcast %cst : f32 to vector<1x256xf32>
    %66 = arith.subf %65, %64 : vector<1x256xf32>
    %67 = arith.mulf %63, %66 : vector<1x256xf32>
    %68 = arith.mulf %58, %67 : vector<1x256xf32>
    %69 = arith.mulf %67, %67 : vector<1x256xf32>
    %70 = arith.mulf %60, %69 : vector<1x256xf32>
    %71 = vector.shape_cast %68 : vector<1x256xf32> to vector<1x1x256xf32>
    %cst_44 = arith.constant dense<0.000000e+00> : vector<1xf32>
    %72 = vector.multi_reduction <add>, %71, %cst_44 [1, 2] : vector<1x1x256xf32> to vector<1xf32>
    %73 = vector.shape_cast %72 : vector<1xf32> to vector<1x1x1xf32>
    %74 = vector.extract %73[0, 0, 0] : f32 from vector<1x1x1xf32>
    %75 = vector.broadcast %74 : f32 to vector<1x1xf32>
    %76 = vector.shape_cast %70 : vector<1x256xf32> to vector<1x1x256xf32>
    %cst_45 = arith.constant dense<0.000000e+00> : vector<1xf32>
    %77 = vector.multi_reduction <add>, %76, %cst_45 [1, 2] : vector<1x1x256xf32> to vector<1xf32>
    %78 = vector.shape_cast %77 : vector<1xf32> to vector<1x1x1xf32>
    %79 = vector.extract %78[0, 0, 0] : f32 from vector<1x1x1xf32>
    %80 = vector.broadcast %79 : f32 to vector<1x1xf32>
    %81 = vector.shape_cast %62 : vector<1x256xf32> to vector<1x1x256xf32>
    %cst_46 = arith.constant dense<0.000000e+00> : vector<1xf32>
    %82 = vector.multi_reduction <add>, %81, %cst_46 [1, 2] : vector<1x1x256xf32> to vector<1xf32>
    %83 = vector.shape_cast %82 : vector<1xf32> to vector<1x1x1xf32>
    %84 = vector.extract %83[0, 0, 0] : f32 from vector<1x1x1xf32>
    %85 = vector.broadcast %84 : f32 to vector<1x1xf32>
    %86 = tpu.iota {dimensions = array<i32: 1>} : vector<8x128xi32>
    %c0_i32 = arith.constant 0 : i32
    %87 = vector.broadcast %c0_i32 : i32 to vector<8x128xi32>
    %88 = arith.cmpi eq, %86, %87 : vector<8x128xi32>
    %89 = vector.shape_cast %75 : vector<1x1xf32> to vector<1x1xf32>
    %90 = vector.broadcast %89 : vector<1x1xf32> to vector<8x128xf32>
    %c1_i32 = arith.constant 1 : i32
    %91 = vector.broadcast %c1_i32 : i32 to vector<8x128xi32>
    %92 = arith.cmpi eq, %86, %91 : vector<8x128xi32>
    %93 = vector.shape_cast %80 : vector<1x1xf32> to vector<1x1xf32>
    %94 = vector.broadcast %93 : vector<1x1xf32> to vector<8x128xf32>
    %c2_i32 = arith.constant 2 : i32
    %95 = vector.broadcast %c2_i32 : i32 to vector<8x128xi32>
    %96 = arith.cmpi eq, %86, %95 : vector<8x128xi32>
    %97 = vector.shape_cast %85 : vector<1x1xf32> to vector<1x1xf32>
    %98 = vector.broadcast %97 : vector<1x1xf32> to vector<8x128xf32>
    %cst_47 = arith.constant 0.000000e+00 : f32
    %99 = vector.broadcast %cst_47 : f32 to vector<8x128xf32>
    %100 = arith.select %96, %98, %99 : vector<8x128xi1>, vector<8x128xf32>
    %101 = arith.select %92, %94, %100 : vector<8x128xi1>, vector<8x128xf32>
    %102 = arith.select %88, %90, %101 : vector<8x128xi1>, vector<8x128xf32>
    %c0_48 = arith.constant 0 : index
    %c0_49 = arith.constant 0 : index
    %c0_50 = arith.constant 0 : index
    %c0_51 = arith.constant 0 : index
    %103 = vector.load %arg4[%c0_48, %c0_49, %c0_50, %c0_51] : memref<1x1x8x128xf32, #tpu.memory_space<vmem>>, vector<1x1x8x128xf32>
    %104 = vector.shape_cast %103 : vector<1x1x8x128xf32> to vector<8x128xf32>
    %105 = vector.shape_cast %102 : vector<8x128xf32> to vector<1x1x8x128xf32>
    tpu.vector_store %arg4[%c0_48, %c0_49, %c0_50, %c0_51], %105 {strides = array<i32>} : memref<1x1x8x128xf32, #tpu.memory_space<vmem>>, vector<1x1x8x128xf32>,
    return
  }
  func.func @transform_0(%arg0: i32, %arg1: i32) -> (i32, i32, i32, i32) {
    %c0_i32 = arith.constant 0 : i32
    %c0_i32_0 = arith.constant 0 : i32
    %c0_i32_1 = arith.constant 0 : i32
    return %arg0, %c0_i32, %arg1, %c0_i32_0 : i32, i32, i32, i32
  }
  func.func @transform_1(%arg0: i32, %arg1: i32) -> (i32, i32, i32, i32) {
    %c0_i32 = arith.constant 0 : i32
    %c0_i32_0 = arith.constant 0 : i32
    %c0_i32_1 = arith.constant 0 : i32
    return %arg0, %c0_i32, %arg1, %c0_i32_0 : i32, i32, i32, i32
  }
  func.func @transform_2(%arg0: i32, %arg1: i32) -> (i32, i32, i32, i32) {
    %c0_i32 = arith.constant 0 : i32
    %c0_i32_0 = arith.constant 0 : i32
    %c0_i32_1 = arith.constant 0 : i32
    return %arg0, %arg1, %c0_i32, %c0_i32_0 : i32, i32, i32, i32
  }
}

</mosaic_0001>

<llo_original>
// kernel: tpu_custom_call.1
$region0: #{tpu_custom_call.1}
  #allocation0 [shape = 'u32[]', space=smem, size = 0x4, offset = 0x4, fixed_abs, tag = 'smem constant byte address 0x4 - core index']
  #allocation1 [shape = 'u32[144,128]{1,0:T(1,128)}', space=vmem, size = 0x12000, scoped, tag = 'internal scratch']
  %s0 = inlined_call_operand.vmem [shape: f32[2,4,1,256], index: 0, kind: input, shape index: {}]
  %s1 = inlined_call_operand.vmem [shape: bf16[2,4,1,256], index: 1, kind: input, shape index: {}]
  %s2 = inlined_call_operand.hbm [shape: f32[2,1,8,128], index: 2, kind: output, shape index: {}]
  %s3 = sld [smem:[#allocation0]]
  $region41: #{tpu_custom_call.1} parent=0
    _
  %s5 = ssub.s32 1, %s3
  %s6 = scalar_select 0, %s5, %s3
  $region1: #{tpu_custom_call.1} parent=0
    #allocation2 [shape = 'u8[8192]{0}', space=vmem, size = 0x2000, scoped, tag = 'output window, operand 0']
    #allocation3 [shape = 's32[2]{0}', space=sflag, size = 0x8, scoped, tag = 'scoped memory for tpu_custom_call.1']
    %7 = vsyncpa [#allocation3], 0
    %s8 = scalar_lea.sflag [#allocation3], 1
    %9 = vsyncpa %s8, 0
    loop: start=0, step=1, limit=4
    $region2: #{tpu_custom_call.1} parent=1 // loop_pre_header
      _
    $region3: #{tpu_custom_call.1} parent=1 // loop_header
      %s11 = sphi 0, %s15
      %p12 = scmp.ge.s32.totalorder %s11, 4
      %s18 = sphi 0, %s30
      %s19 = sphi 0, %s26
      %s20 = sphi 0, %s18
      %s21 = sphi 0, %s19
      %s22 = sphi 0, %s20
      %s23 = sphi 0, %s21
      %s35 = sphi 0, %s37
      %s38 = sphi 0, %s35
      %s39 = sphi 0, %s38
      %s55 = sphi 0, %s39
      %s63 = sphi 0, %s65
      %s66 = sphi 0, %s63
      %s67 = sphi 0, %s66
      %s83 = sphi 0, %s67
      %s91 = sphi 0, %s93
      %s94 = sphi 0, %s91
      %s95 = sphi 0, %s94
      %s111 = sphi 0, %s95
    $region4: #{tpu_custom_call.1} parent=1 // loop_header_branch
      %14 = sbr.rel (%p12) target = $region8
    $region5: #{tpu_custom_call.1} parent=1 // loop_body
      %s16 = ssub.s32 %s11, 1
      %s17 = ssub.s32 %s11, 2
      %s24 = sadd.s32 1, %s19
      %p25 = scmp.ge.s32.totalorder %s24, 1
      %s26 = scalar_select %p25, 0, %s24
      %s27 = sadd.s32 1, %s18
      %s28 = scalar_select %p25, %s27, %s18
      %p29 = scmp.ge.s32.totalorder %s28, 2
      %s30 = scalar_select %p29, 0, %s28
      %s31 = ssub.s32 %s18, %s30
      %s32 = ssub.s32 %s19, %s26
      %s33 = sor.u32 %s31, %s32
      %p34 = scmp.eq.s32.totalorder %s33, 0
      %s36 = sadd.s32 %s35, 1
      %s37 = scalar_select %p34, %s35, %s36
      %p40 = pneg %p34
      %p41 = scmp.eq.s32.totalorder %s11, 1
      %p42 = por %p40, %p41
      %p43 = scmp.ne.s32.totalorder %s35, %s38
      %p44 = scmp.eq.s32.totalorder %s11, 0
      %p45 = por %p43, %p44
      %p46 = scmp.ne.s32.totalorder %s35, %s38
      %p47 = scmp.eq.s32.totalorder %s16, 1
      %p48 = por %p46, %p47
      %p49 = scmp.ne.s32.totalorder %s38, %s39
      %p50 = scmp.eq.s32.totalorder %s16, 0
      %p51 = por %p49, %p50
      %p52 = scmp.ne.s32.totalorder %s38, %s39
      %p53 = scmp.eq.s32.totalorder %s17, 1
      %p54 = por %p52, %p53
      %p56 = scmp.ne.s32.totalorder %s39, %s55
      %p57 = scmp.eq.s32.totalorder %s17, 0
      %p58 = por %p56, %p57
      %s59 = ssub.s32 %s18, %s30
      %s60 = ssub.s32 %s19, %s26
      %s61 = sor.u32 %s59, %s60
      %p62 = scmp.eq.s32.totalorder %s61, 0
      %s64 = sadd.s32 %s63, 1
      %s65 = scalar_select %p62, %s63, %s64
      %p68 = pneg %p62
      %p69 = scmp.eq.s32.totalorder %s11, 1
      %p70 = por %p68, %p69
      %p71 = scmp.ne.s32.totalorder %s63, %s66
      %p72 = scmp.eq.s32.totalorder %s11, 0
      %p73 = por %p71, %p72
      %p74 = scmp.ne.s32.totalorder %s63, %s66
      %p75 = scmp.eq.s32.totalorder %s16, 1
      %p76 = por %p74, %p75
      %p77 = scmp.ne.s32.totalorder %s66, %s67
      %p78 = scmp.eq.s32.totalorder %s16, 0
      %p79 = por %p77, %p78
      %p80 = scmp.ne.s32.totalorder %s66, %s67
      %p81 = scmp.eq.s32.totalorder %s17, 1
      %p82 = por %p80, %p81
      %p84 = scmp.ne.s32.totalorder %s67, %s83
      %p85 = scmp.eq.s32.totalorder %s17, 0
      %p86 = por %p84, %p85
      %s87 = ssub.s32 %s18, %s30
      %s88 = ssub.s32 %s19, %s26
      %s89 = sor.u32 %s87, %s88
      %p90 = scmp.eq.s32.totalorder %s89, 0
      %s92 = sadd.s32 %s91, 1
      %s93 = scalar_select %p90, %s91, %s92
      %p96 = pneg %p90
      %p97 = scmp.eq.s32.totalorder %s11, 1
      %p98 = por %p96, %p97
      %p99 = scmp.ne.s32.totalorder %s91, %s94
      %p100 = scmp.eq.s32.totalorder %s11, 0
      %p101 = por %p99, %p100
      %p102 = scmp.ne.s32.totalorder %s91, %s94
      %p103 = scmp.eq.s32.totalorder %s16, 1
      %p104 = por %p102, %p103
      %p105 = scmp.ne.s32.totalorder %s94, %s95
      %p106 = scmp.eq.s32.totalorder %s16, 0
      %p107 = por %p105, %p106
      %p108 = scmp.ne.s32.totalorder %s94, %s95
      %p109 = scmp.eq.s32.totalorder %s17, 1
      %p110 = por %p108, %p109
      %p112 = scmp.ne.s32.totalorder %s95, %s111
      %p113 = scmp.eq.s32.totalorder %s17, 0
      %p114 = por %p112, %p113
      %p115 = scmp.le.s32.totalorder 1, %s11
      %p116 = scmp.lt.s32.totalorder %s11, 3
      %p117 = pnand %p115, %p116
      %p118 = pneg %p117
      // Predicated region
      $region9: #{tpu_custom_call.1} parent=5 // pred_check
        _
      $region10: #{tpu_custom_call.1} parent=5 // pred_check_branch
        %120 = sbr.rel (%p117) target = $region12
      $region11: #{tpu_custom_call.1} parent=5 // pred_region
        %s121 = ssub.s32 %s11, 1
      $region12: #{tpu_custom_call.1} parent=5 // pred_fallthru
        _
      %p122 = scmp.lt.s32.totalorder %s11, 2
      // Predicated region
      $region13: #{tpu_custom_call.1} parent=5 // pred_check
        %p123 = pneg %p122
      $region14: #{tpu_custom_call.1} parent=5 // pred_check_branch
        %125 = sbr.rel (%p123) target = $region16
      $region15: #{tpu_custom_call.1} parent=5 // pred_region
        // Predicated region
        $region17: #{tpu_custom_call.1} parent=15 // pred_check
          %p126 = pneg %p45
        $region18: #{tpu_custom_call.1} parent=15 // pred_check_branch
          %128 = sbr.rel (%p126) target = $region20
        $region19: #{tpu_custom_call.1} parent=15 // pred_region
          %p129 = scmp.lt.s32.totalorder %s18, 1
          %s130 = scalar_select %p129, %s18, 1
          %p131 = scmp.lt.s32.totalorder %s19, 0
          %s132 = scalar_select %p131, %s19, 0
          %s133 = smul.addr %s132, 2
          %s134 = smul.addr %s130, 8
          %s135 = sadd.s32 %s133, %s134
          %s136 = scalar_lea.vmem %s0, %s135
        $region20: #{tpu_custom_call.1} parent=15 // pred_fallthru
          _
        // Predicated region
        $region21: #{tpu_custom_call.1} parent=15 // pred_check
          %p137 = pneg %p73
        $region22: #{tpu_custom_call.1} parent=15 // pred_check_branch
          %139 = sbr.rel (%p137) target = $region24
        $region23: #{tpu_custom_call.1} parent=15 // pred_region
          %p140 = scmp.lt.s32.totalorder %s18, 1
          %s141 = scalar_select %p140, %s18, 1
          %p142 = scmp.lt.s32.totalorder %s19, 0
          %s143 = scalar_select %p142, %s19, 0
          %s144 = smul.addr %s143, 2
          %s145 = smul.addr %s141, 8
          %s146 = sadd.s32 %s144, %s145
          %s147 = scalar_lea.vmem %s1, %s146
        $region24: #{tpu_custom_call.1} parent=15 // pred_fallthru
          _
      $region16: #{tpu_custom_call.1} parent=5 // pred_fallthru
        _
      %p148 = scmp.le.s32.totalorder 1, %s11
      %p149 = scmp.lt.s32.totalorder %s11, 3
      %p150 = pnand %p148, %p149
      %p151 = pneg %p150
      // Predicated region
      $region25: #{tpu_custom_call.1} parent=5 // pred_check
        _
      $region26: #{tpu_custom_call.1} parent=5 // pred_check_branch
        %153 = sbr.rel (%p150) target = $region28
      $region27: #{tpu_custom_call.1} parent=5 // pred_region
        %s154 = ssub.s32 %s11, 1
        %p155 = scmp.lt.s32.totalorder %s20, 1
        %s156 = scalar_select %p155, %s20, 1
        %p157 = scmp.lt.s32.totalorder %s21, 0
        %s158 = scalar_select %p157, %s21, 0
        %s159 = smul.addr %s158, 2
        %s160 = smul.addr %s156, 8
        %s161 = sadd.s32 %s159, %s160
        %s162 = scalar_lea.vmem %s0, %s161
        %p163 = pneg %p51
        %p164 = pneg %p48
        %p165 = scmp.lt.s32.totalorder %s20, 1
        %s166 = scalar_select %p165, %s20, 1
        %p167 = scmp.lt.s32.totalorder %s21, 0
        %s168 = scalar_select %p167, %s21, 0
        %s169 = smul.addr %s168, 2
        %s170 = smul.addr %s166, 8
        %s171 = sadd.s32 %s169, %s170
        %s172 = scalar_lea.vmem %s1, %s171
        %p173 = pneg %p79
        %p174 = pneg %p76
        %p175 = pneg %p107
        %p176 = pneg %p104
        %s177 = sand.u32 %s94, 1
        %s178 = scalar_lea.sflag [#allocation3], %s177
        %s179 = sand.u32 %s94, 1
        %s180 = smul.addr %s179, 8
        %s181 = scalar_lea.vmem [#allocation2], %s180
        %p182 = scmp.lt.s32.totalorder %s20, 1
        %s183 = scalar_select %p182, %s20, 1
        %p184 = scmp.lt.s32.totalorder %s21, 0
        %s185 = scalar_select %p184, %s21, 0
        %s186 = smul.addr %s185, 2
        %s187 = smul.addr %s183, 8
        %s188 = sadd.s32 %s186, %s187
        %s189 = scalar_lea.vmem %s0, %s188
        %p190 = scmp.lt.s32.totalorder %s20, 1
        %s191 = scalar_select %p190, %s20, 1
        %p192 = scmp.lt.s32.totalorder %s21, 0
        %s193 = scalar_select %p192, %s21, 0
        %s194 = smul.addr %s193, 2
        %s195 = smul.addr %s191, 8
        %s196 = sadd.s32 %s194, %s195
        %s197 = scalar_lea.vmem %s1, %s196
        %v198 = vld [vmem:[%s189] sm:$0x3]
        %s199 = scalar_lea.vmem %s189, 2
        %v200 = vld [vmem:[%s199] sm:$0x3]
        %v201 = vmax.f32 %v198, %v200
        %s202 = scalar_lea.vmem %s189, 4
        %v203 = vld [vmem:[%s202] sm:$0x3]
        %v204 = vmax.f32 %v201, %v203
        %s205 = scalar_lea.vmem %s189, 6
        %v206 = vld [vmem:[%s205] sm:$0x3]
        %v207 = vmax.f32 %v204, %v206
        %v208 = vsub.f32 %v198, %v207
        %v209 = vmul.f32 %v208, 1.442695
        %v210 = vpow.pop %v209
        %v211 = vld [vmem:[%s197] sm:$0x3]
        %v212 = vunpack.c.l.bf16 %v211
        %v215 = vunpack.c.l.s4 1966171168
        %v216 = vunpack.c.0.s8 %v215
        %v217 = vlaneseq
        %v218 = vshrl.u32 %v217, 7
        %v219 = vsub.s32 %v216, %v218
        %v220 = vrot.slane %v212, %v219
        %v222 = vmul.f32 %v210, %v220
        %v223 = vmul.f32 %v210, %v210
        %v224 = vmul.f32 %v212, %v212
        %v225 = vsub.f32 %v200, %v207
        %v226 = vmul.f32 %v225, 1.442695
        %v227 = vpow.pop %v226
        %s228 = scalar_lea.vmem %s197, 2
        %v229 = vld [vmem:[%s228] sm:$0x3]
        %v230 = vunpack.c.l.bf16 %v229
        %v231 = vadd.f32 %v210, %v227
        %v234 = vunpack.c.l.s4 1966171168
        %v235 = vunpack.c.0.s8 %v234
        %v236 = vlaneseq
        %v237 = vshrl.u32 %v236, 7
        %v238 = vsub.s32 %v235, %v237
        %v239 = vrot.slane %v230, %v238
        %v241 = vmul.f32 %v227, %v239
        %v242 = vadd.f32 %v222, %v241
        %v243 = vmul.f32 %v227, %v227
        %v244 = vadd.f32 %v223, %v243
        %v245 = vmul.f32 %v230, %v230
        %v246 = vadd.f32 %v224, %v245
        %v247 = vsub.f32 %v203, %v207
        %v248 = vmul.f32 %v247, 1.442695
        %v249 = vpow.pop %v248
        %s250 = scalar_lea.vmem %s197, 4
        %v251 = vld [vmem:[%s250] sm:$0x3]
        %v252 = vunpack.c.l.bf16 %v251
        %v253 = vadd.f32 %v231, %v249
        %v256 = vunpack.c.l.s4 1966171168
        %v257 = vunpack.c.0.s8 %v256
        %v258 = vlaneseq
        %v259 = vshrl.u32 %v258, 7
        %v260 = vsub.s32 %v257, %v259
        %v261 = vrot.slane %v252, %v260
        %v263 = vmul.f32 %v249, %v261
        %v264 = vadd.f32 %v242, %v263
        %v265 = vmul.f32 %v249, %v249
        %v266 = vadd.f32 %v244, %v265
        %v267 = vmul.f32 %v252, %v252
        %v268 = vadd.f32 %v246, %v267
        %v269 = vsub.f32 %v206, %v207
        %v270 = vmul.f32 %v269, 1.442695
        %v271 = vpow.pop %v270
        %s272 = scalar_lea.vmem %s197, 6
        %v273 = vld [vmem:[%s272] sm:$0x3]
        %v274 = vunpack.c.l.bf16 %v273
        %v275 = vadd.f32 %v253, %v271
        %v278 = vunpack.c.l.s4 1966171168
        %v279 = vunpack.c.0.s8 %v278
        %v280 = vlaneseq
        %v281 = vshrl.u32 %v280, 7
        %v282 = vsub.s32 %v279, %v281
        %v283 = vrot.slane %v274, %v282
        %v285 = vmul.f32 %v271, %v283
        %v286 = vadd.f32 %v264, %v285
        %v287 = vmul.f32 %v271, %v271
        %v288 = vadd.f32 %v266, %v287
        %v289 = vmul.f32 %v274, %v274
        %v290 = vadd.f32 %v268, %v289
        %v291 = vrcp.pop %v275
        %v292 = vmul.f32 %v275, %v291
        %v293 = vsub.f32 2.0, %v292
        %v294 = vmul.f32 %v291, %v293
        %v295 = vmul.f32 %v286, %v294
        %v296 = vmul.f32 %v294, %v294
        %v297 = vmul.f32 %v288, %v296
        %v299 = vlaneseq
        %v300 = vshrl.u32 %v299, 7
        %v301 = vsub.s32 0, %v300
        %v302 = vrot.slane %v295, %v301
        %v303 = vlaneseq
        %v304 = vshrl.u32 %v303, 7
        %v305 = vsub.s32 1, %v304
        %v306 = vrot.slane %v295, %v305
        %vm309 = vcmask 1040384
        %v310 = vsel %vm309, %v302, 0.0
        %v311 = vsel %vm309, %v306, 0.0
        %v312 = vadd.f32 %v310, %v311
        %313 = vadd.xlane.f32.xlu0 %v312
        %v314 = vpop.xlane.xlu0 %313
        %v315 = vrot.slane %v314, 4
        %v316 = vadd.f32 %v314, %v315
        %v317 = vrot.slane %v316, 2
        %v318 = vadd.f32 %v316, %v317
        %v319 = vrot.slane %v318, 1
        %v320 = vadd.f32 %v318, %v319
        %s321 = vtos %v320
        %v323 = vlaneseq
        %v324 = vshrl.u32 %v323, 7
        %v325 = vsub.s32 0, %v324
        %v326 = vrot.slane %v297, %v325
        %v327 = vlaneseq
        %v328 = vshrl.u32 %v327, 7
        %v329 = vsub.s32 1, %v328
        %v330 = vrot.slane %v297, %v329
        %v333 = vsel %vm309, %v326, 0.0
        %v334 = vsel %vm309, %v330, 0.0
        %v335 = vadd.f32 %v333, %v334
        %336 = vadd.xlane.f32.xlu0 %v335
        %v337 = vpop.xlane.xlu0 %336
        %v338 = vrot.slane %v337, 4
        %v339 = vadd.f32 %v337, %v338
        %v340 = vrot.slane %v339, 2
        %v341 = vadd.f32 %v339, %v340
        %v342 = vrot.slane %v341, 1
        %v343 = vadd.f32 %v341, %v342
        %s344 = vtos %v343
        %v346 = vlaneseq
        %v347 = vshrl.u32 %v346, 7
        %v348 = vsub.s32 0, %v347
        %v349 = vrot.slane %v290, %v348
        %v350 = vlaneseq
        %v351 = vshrl.u32 %v350, 7
        %v352 = vsub.s32 2, %v351
        %v353 = vrot.slane %v290, %v352
        %v356 = vsel %vm309, %v349, 0.0
        %v357 = vsel %vm309, %v353, 0.0
        %v358 = vadd.f32 %v356, %v357
        %359 = vadd.xlane.f32.xlu0 %v358
        %v360 = vpop.xlane.xlu0 %359
        %v361 = vrot.slane %v360, 4
        %v362 = vadd.f32 %v360, %v361
        %v363 = vrot.slane %v362, 2
        %v364 = vadd.f32 %v362, %v363
        %v365 = vrot.slane %v364, 1
        %v366 = vadd.f32 %v364, %v365
        %s367 = vtos %v366
        %v368 = vlaneseq
        %v369 = vand.u32 %v368, 127
        %vm370 = vcmp.eq.s32.totalorder %v369, 0
        %v371 = vstv %s321
        %vm372 = vcmp.eq.s32.totalorder %v369, 1
        %v373 = vstv %s344
        %vm374 = vcmp.eq.s32.totalorder %v369, 2
        %v375 = vstv %s367
        %v376 = vsel %vm374, %v375, 0.0
        %v377 = vsel %vm372, %v373, %v376
        %v378 = vsel %vm370, %v371, %v377
        %379 = vst [vmem:[%s181] sm:$0xff] %v378
        %s380 = sand.u32 %s94, 1
        %s381 = scalar_lea.sflag [#allocation3], %s380
        %s382 = sand.u32 %s94, 1
        %s383 = smul.addr %s382, 8
        %s384 = scalar_lea.vmem [#allocation2], %s383
        // Predicated region
        $region29: #{tpu_custom_call.1} parent=27 // pred_check
          %p385 = pneg %p104
        $region30: #{tpu_custom_call.1} parent=27 // pred_check_branch
          %387 = sbr.rel (%p385) target = $region32
        $region31: #{tpu_custom_call.1} parent=27 // pred_region
          %s389 = ssub.s32 128, 128
          %390 = vsyncadd %s381, %s389
          %s391 = sadd.s32 %s21, %s20
          %s392 = smul.addr %s391, 128
          %s393 = scalar_lea.hbm %s2, %s392
          %s395 = sshll.u32 %s384, 4
          %s396 = int_to_ptr.vmem [resolvable:$true] %s395
          %398 = dma.vmem_to_hbm [thread:$0]  %s396, 128, %s393, %s381
        $region32: #{tpu_custom_call.1} parent=27 // pred_fallthru
          _
      $region28: #{tpu_custom_call.1} parent=5 // pred_fallthru
        _
      %p399 = scmp.le.s32.totalorder 2, %s11
      // Predicated region
      $region33: #{tpu_custom_call.1} parent=5 // pred_check
        %p400 = pneg %p399
      $region34: #{tpu_custom_call.1} parent=5 // pred_check_branch
        %402 = sbr.rel (%p400) target = $region36
      $region35: #{tpu_custom_call.1} parent=5 // pred_region
        %s403 = ssub.s32 %s11, 2
        // Predicated region
        $region37: #{tpu_custom_call.1} parent=35 // pred_check
          %p404 = pneg %p110
        $region38: #{tpu_custom_call.1} parent=35 // pred_check_branch
          %406 = sbr.rel (%p404) target = $region40
        $region39: #{tpu_custom_call.1} parent=35 // pred_region
          %s407 = sand.u32 %s95, 1
          %s408 = scalar_lea.sflag [#allocation3], %s407
          %s409 = sand.u32 %s95, 1
          %s410 = smul.addr %s409, 8
          %s411 = scalar_lea.vmem [#allocation2], %s410
          %412 = dma.done %s408, 128
        $region40: #{tpu_custom_call.1} parent=35 // pred_fallthru
          _
      $region36: #{tpu_custom_call.1} parent=5 // pred_fallthru
        _
    $region6: #{tpu_custom_call.1} parent=1 // loop_footer
      %s15 = sadd.s32 1, %s11
    $region7: #{tpu_custom_call.1} parent=1 // loop_footer_branch
      %10 = sbr.rel target = $region3
    $region8: #{tpu_custom_call.1} parent=1 // loop_exit
      _
    %413 = vsyncpa [#allocation3], 1
    %s414 = scalar_lea.sflag [#allocation3], 1
    %415 = vsyncpa %s414, 1

</llo_original>
